<compile_context>
chip_gen: v7x
topology: tpu7x:2x2x1
jax: 0.10.0
libtpu: 0.0.40
codegen_flags: <defaults>
</compile_context>

<pallas_src>
import functools
import math

import numpy as np

import jax
import jax.numpy as jnp
from jax import lax
from jax.experimental import pallas as pl
from jax.experimental.pallas import tpu as pltpu


# ----------------------------------------------------------------------------
# Host-side deterministic parameter construction (Wigner 3j, real basis, e3nn
# convention) -- replaces e3nn.o3.wigner_3j; pure setup glue in numpy.
# ----------------------------------------------------------------------------
class Irreps:
    """Minimal stand-in for e3nn Irreps: list of l's with multiplicity 1 each."""

    def __init__(self, ls):
        self.ls = list(ls)
        self.dim = sum(2 * l + 1 for l in self.ls)
        self.lmax = max(self.ls)


def _su2_cg_coeff(j1, m1, j2, m2, j3, m3):
    """Complex-basis SU(2) Clebsch-Gordan coefficient (Racah formula)."""
    if m3 != m1 + m2:
        return 0.0
    f = lambda n: math.factorial(int(round(n)))
    C = (
        (2 * j3 + 1)
        * f(j3 + j1 - j2) * f(j3 - j1 + j2) * f(j1 + j2 - j3)
        * f(j3 + m3) * f(j3 - m3)
        / (f(j1 + j2 + j3 + 1) * f(j1 - m1) * f(j1 + m1) * f(j2 - m2) * f(j2 + m2))
    ) ** 0.5
    S = 0.0
    for v in range(j1 + j2 + j3 + 1):
        if (j1 + j2 - j3 - v >= 0 and j1 - m1 - v >= 0 and j2 + m2 - v >= 0
                and j3 - j2 + m1 + v >= 0 and j3 - j1 - m2 + v >= 0):
            S += (-1) ** v / (
                f(v) * f(j1 + j2 - j3 - v) * f(j1 - m1 - v) * f(j2 + m2 - v)
                * f(j3 - j2 + m1 + v) * f(j3 - j1 - m2 + v)
            )
    return C * S


def _su2_clebsch_gordan(j1, j2, j3):
    mat = np.zeros((2 * j1 + 1, 2 * j2 + 1, 2 * j3 + 1), dtype=np.float64)
    if abs(j1 - j2) <= j3 <= j1 + j2:
        for m1 in range(-j1, j1 + 1):
            for m2 in range(-j2, j2 + 1):
                m3 = m1 + m2
                if -j3 <= m3 <= j3:
                    mat[j1 + m1, j2 + m2, j3 + m3] = _su2_cg_coeff(j1, m1, j2, m2, j3, m3)
    return mat


def _change_basis_real_to_complex(l):
    q = np.zeros((2 * l + 1, 2 * l + 1), dtype=np.complex128)
    for m in range(-l, 0):
        q[l + m, l + abs(m)] = 1.0 / math.sqrt(2)
        q[l + m, l - abs(m)] = -1j / math.sqrt(2)
    q[l, l] = 1.0
    for m in range(1, l + 1):
        q[l + m, l + abs(m)] = (-1) ** m / math.sqrt(2)
        q[l + m, l - abs(m)] = 1j * (-1) ** m / math.sqrt(2)
    return ((-1j) ** l) * q


def wigner_3j(l1, l2, l3):
    """Real-basis Wigner 3j tensor, shape (2l1+1, 2l2+1, 2l3+1), unit Frobenius norm."""
    Q1 = _change_basis_real_to_complex(l1)
    Q2 = _change_basis_real_to_complex(l2)
    Q3 = _change_basis_real_to_complex(l3)
    C = _su2_clebsch_gordan(l1, l2, l3).astype(np.complex128)
    C = np.einsum("ij,kl,mn,ikn->jlm", Q1, Q2, np.conj(Q3.T), C)
    C = np.real(C)
    n = np.linalg.norm(C)
    if n > 0:
        C = C / n
    return C


def build_cb_matrix(irreps_in1, irreps_in2):
    """Replicates COOTensorProduct.__init__, returning a dense CB matrix of
    shape (cb_height, irreps_in1.dim * irreps_in2.dim)."""
    cb_matrix_layout = {}
    cb_height = 0
    idx_in1 = 0
    for l1 in irreps_in1.ls:
        idx_in2 = 0
        for l2 in irreps_in2.ls:
            for l3 in range(abs(l1 - l2), l1 + l2 + 1):
                cb_matrix_layout.setdefault(l3, []).append(
                    (l1, l2, idx_in1 * irreps_in2.dim + idx_in2))
                cb_height += 2 * l3 + 1
            idx_in2 += 2 * l2 + 1
        idx_in1 += 2 * l1 + 1

    rows, cols, vals = [], [], []
    row_offset = 0
    for l3 in sorted(cb_matrix_layout.keys()):
        mults = cb_matrix_layout[l3]
        # Same (possibly colliding) sort key as the PyTorch module; Python's
        # sort is stable so the row ordering replicates torch exactly.
        mults.sort(key=lambda x: x[0] * irreps_in2.lmax + x[1])
        for (l1, l2, col_offset) in mults:
            cb = wigner_3j(l1, l2, l3)
            for m3 in range(2 * l3 + 1):
                for m2 in range(2 * l2 + 1):
                    for m1 in range(2 * l1 + 1):
                        v = cb[m1, m2, m3]
                        if abs(v) < 1e-12:
                            continue
                        rows.append(m3 + row_offset)
                        cols.append(m1 * irreps_in2.dim + m2 + col_offset)
                        vals.append(v * math.sqrt(2 * l3 + 1))
            row_offset += 2 * l3 + 1

    dense = np.zeros((cb_height, irreps_in1.dim * irreps_in2.dim), dtype=np.float64)
    if rows:
        # torch.sparse_coo_tensor sums duplicate coords; replicate with add.at
        np.add.at(dense, (np.array(rows), np.array(cols)), np.array(vals))
    return dense


def prepare_constants(cb_dense, d1, d2):
    """Build (once, host-side) the transposed CB matrix plus the two tiny 0/1
    'expansion' matrices used to assemble the flattened outer product on the
    MXU:  R[i, i*d2+j] = 1,  S[j, i*d2+j] = 1."""
    k = d1 * d2
    assert cb_dense.shape[1] == k
    r = np.zeros((d1, k), dtype=np.float32)
    s = np.zeros((d2, k), dtype=np.float32)
    for i in range(d1):
        r[i, i * d2:(i + 1) * d2] = 1.0
    for j in range(d2):
        s[j, j::d2] = 1.0
    return (jnp.asarray(cb_dense.T, dtype=jnp.float32),
            jnp.asarray(r), jnp.asarray(s))


# ----------------------------------------------------------------------------
# Pallas kernel (batch-major layout, batch on the sublane axis):
#   out[n, h] = sum_{i,j} cbT[i*D2+j, h] * in1[n, i] * in2[n, j]
# ----------------------------------------------------------------------------
def coo_tp_kernel(cbt_ref, rmat_ref, smat_ref, in1_ref, in2_ref, out_ref, *,
                  chunk):
    # Resident tiny constants (constant index_map -> fetched once, reused).
    cbt = cbt_ref[...].astype(jnp.float32)    # (D1*D2, H)
    rmat = rmat_ref[...].astype(jnp.float32)  # (D1, D1*D2)
    smat = smat_ref[...].astype(jnp.float32)  # (D2, D1*D2)

    nchunks = out_ref.shape[0] // chunk       # tb % chunk == 0 by construction

    def body(c, carry):
        off = pl.multiple_of(c * chunk, chunk)
        # Upcast to f32 in vregs (also required for bf16 inputs on v5e's VPU).
        a = in1_ref[pl.ds(off, chunk), :].astype(jnp.float32)   # (chunk, D1)
        b = in2_ref[pl.ds(off, chunk), :].astype(jnp.float32)   # (chunk, D2)
        # Flattened outer product built on the MXU (no lane/sublane shuffles):
        #   a_rep[n, i*D2+j] = a[n, i],  b_til[n, i*D2+j] = b[n, j]
        a_rep = jnp.dot(a, rmat, preferred_element_type=jnp.float32)
        b_til = jnp.dot(b, smat, preferred_element_type=jnp.float32)
        outer = a_rep * b_til                                    # (chunk, D1*D2)
        # Contract with CB^T on the MXU; f32 accumulate, cast on store.
        out_ref[pl.ds(off, chunk), :] = jnp.dot(
            outer, cbt, preferred_element_type=jnp.float32
        ).astype(out_ref.dtype)
        return carry

    lax.fori_loop(0, nchunks, body, 0)


def _round_up(x, m):
    return ((x + m - 1) // m) * m


def _choose_tiles(batch, d1, d2, h, itemsize):
    """Pick (batch_tile, compute_chunk).

    VMEM accounting uses lane-padded widths (last dims D1/D2/H pad to 128 in
    VMEM), double-buffered input/output tiles.  The per-chunk (chunk, D1*D2)
    matmul intermediates and the CB/R/S constants are small and covered by the
    slack under the explicit 32 MiB vmem limit.
    """
    lane = 128
    row_bytes = (_round_up(d1, lane) + _round_up(d2, lane)
                 + _round_up(h, lane)) * itemsize
    tile_budget = 22 * 1024 * 1024                  # double-buffered in/out tiles
    tb_max = max(128, (tile_budget // (2 * row_bytes)) // 128 * 128)

    b128 = _round_up(max(batch, 1), 128)
    # Enough grid steps to feed both v7x TensorCores (>=2 each) and keep the
    # DMA pipeline busy, while splitting the batch nearly evenly so tile
    # quantization never wastes a large fraction of a tile.
    min_steps = 4
    nsteps = max(pl.cdiv(b128, tb_max), min(min_steps, pl.cdiv(b128, 128)))
    tb = min(_round_up(pl.cdiv(b128, nsteps), 128), b128)

    # Compute chunk: largest 128*2^k divisor of tb, capped at 512 rows, so the
    # (chunk, D1*D2) intermediates stay a few vregs / a few hundred KiB.
    chunk = 128
    while chunk * 2 <= min(tb, 512) and tb % (chunk * 2) == 0:
        chunk *= 2
    return tb, chunk


@jax.jit
def coo_tensor_product(in1, in2, cb_t, rmat, smat):
    """in1: (B, D1), in2: (B, D2), cb_t: (D1*D2, H) -> out: (B, H).

    All activations stay in the module's natural batch-major layout; there are
    no wrapper-side transposes, pads or slices (those were 2-3x extra HBM
    traffic for this bandwidth-bound op).  cb_t / rmat / smat are tiny
    constants prepared once host-side.
    """
    B, d1 = in1.shape
    d2 = in2.shape[1]
    k, h = cb_t.shape
    assert k == d1 * d2

    itemsize = jnp.dtype(in1.dtype).itemsize
    tb, chunk = _choose_tiles(B, d1, d2, h, itemsize)
    grid = (pl.cdiv(B, tb),)   # partial last block handled by Pallas (row-local math)

    kernel = functools.partial(coo_tp_kernel, chunk=chunk)
    out_itemsize = itemsize
    cost = pl.CostEstimate(
        flops=2 * B * h * d1 * d2,
        transcendentals=0,
        bytes_accessed=B * (d1 + d2) * itemsize + B * h * out_itemsize
        + (k * h + d1 * k + d2 * k) * 4,
    )

    return pl.pallas_call(
        kernel,
        out_shape=jax.ShapeDtypeStruct((B, h), in1.dtype),
        grid=grid,
        in_specs=[
            pl.BlockSpec((k, h), lambda i: (0, 0)),      # CB^T  (resident)
            pl.BlockSpec((d1, k), lambda i: (0, 0)),     # R     (resident)
            pl.BlockSpec((d2, k), lambda i: (0, 0)),     # S     (resident)
            pl.BlockSpec((tb, d1), lambda i: (i, 0)),    # in1 batch tile
            pl.BlockSpec((tb, d2), lambda i: (i, 0)),    # in2 batch tile
        ],
        out_specs=pl.BlockSpec((tb, h), lambda i: (i, 0)),
        compiler_params=pltpu.CompilerParams(
            dimension_semantics=("parallel",),
            vmem_limit_bytes=32 * 1024 * 1024,
        ),
        cost_estimate=cost,
    )(cb_t, rmat, smat, in1, in2)


if __name__ == "__main__":
    # Small irreps: 0e + 1e on both inputs -> dim1 = dim2 = 4, cb_height = 16
    irreps1 = Irreps([0, 1])
    irreps2 = Irreps([0, 1])

    cb_dense = build_cb_matrix(irreps1, irreps2)            # (H, D1*D2) = (16, 16)
    d1, d2 = irreps1.dim, irreps2.dim
    h = cb_dense.shape[0]
    cb_t, rmat, smat = prepare_constants(cb_dense, d1, d2)
    cb = jnp.asarray(cb_dense, dtype=jnp.float32)

    key = jax.random.PRNGKey(0)
    k1, k2, k3, k4 = jax.random.split(key, 4)

    def run_and_check(batch, ka, kb):
        in1 = jax.random.normal(ka, (batch, d1), dtype=jnp.float32)
        in2 = jax.random.normal(kb, (batch, d2), dtype=jnp.float32)
        out = coo_tensor_product(in1, in2, cb_t, rmat, smat)
        jax.block_until_ready(out)
        # Pure-JAX reference of the PyTorch forward:
        # torch.t(cb @ torch.t(einsum('bi,bj->bij').reshape(B,-1))) == outer @ cb^T
        ref = jnp.einsum("bi,bj->bij", in1, in2).reshape(batch, -1) @ cb.T
        assert out.shape == (batch, h)
        assert jnp.allclose(out, ref, atol=2e-5, rtol=2e-5), float(
            jnp.max(jnp.abs(out - ref)))
        return out

    # Module-sized example (single, clipped block; pure launch overhead at B=8).
    run_and_check(8, k1, k2)
    # Larger batch exercising the multi-step grid, multi-chunk inner loop and
    # the clipped partial last block -- the regime the kernel is built for.
    run_and_check(6000, k3, k4)

    print("KERNEL_OK")
</pallas_src>

<mosaic_0001>
module attributes {stable_mosaic.version = 11 : i64} {
  func.func @coo_tp_kernel(%arg0: i32, %arg1: memref<16x16xf32, #tpu.memory_space<vmem>>, %arg2: memref<4x16xf32, #tpu.memory_space<vmem>>, %arg3: memref<4x16xf32, #tpu.memory_space<vmem>>, %arg4: memref<128x4xf32, #tpu.memory_space<vmem>>, %arg5: memref<128x4xf32, #tpu.memory_space<vmem>>, %arg6: memref<128x16xf32, #tpu.memory_space<vmem>>) attributes {dimension_semantics = [#tpu.dimension_semantics<parallel>], iteration_bounds = array<i64: 1>, scalar_prefetch = 0 : i64, scratch_operands = 0 : i64, tpu.core_type = #tpu.core_type<tc>, window_params = [{pipeline_mode = #tpu.pipeline_mode<synchronous>, transform_indices = @transform_0, window_bounds = array<i64: 16, 16>}, {pipeline_mode = #tpu.pipeline_mode<synchronous>, transform_indices = @transform_1, window_bounds = array<i64: 4, 16>}, {pipeline_mode = #tpu.pipeline_mode<synchronous>, transform_indices = @transform_2, window_bounds = array<i64: 4, 16>}, {transform_indices = @transform_3, window_bounds = array<i64: 128, 4>}, {transform_indices = @transform_4, window_bounds = array<i64: 128, 4>}, {transform_indices = @transform_5, window_bounds = array<i64: 128, 16>}]} {
    %c0 = arith.constant 0 : index
    %c0_0 = arith.constant 0 : index
    %0 = vector.load %arg1[%c0, %c0_0] : memref<16x16xf32, #tpu.memory_space<vmem>>, vector<16x16xf32>
    %c0_1 = arith.constant 0 : index
    %c0_2 = arith.constant 0 : index
    %1 = vector.load %arg2[%c0_1, %c0_2] : memref<4x16xf32, #tpu.memory_space<vmem>>, vector<4x16xf32>
    %c0_3 = arith.constant 0 : index
    %c0_4 = arith.constant 0 : index
    %2 = vector.load %arg3[%c0_3, %c0_4] : memref<4x16xf32, #tpu.memory_space<vmem>>, vector<4x16xf32>
    %c0_i32 = arith.constant 0 : i32
    %c128_i32 = arith.constant 128 : i32
    %3 = arith.muli %c0_i32, %c128_i32 : i32
    %4 = tpu.assume_multiple %3, 128 : i32
    %5 = arith.index_cast %4 : i32 to index
    %c0_5 = arith.constant 0 : index
    %6 = vector.load %arg4[%5, %c0_5] : memref<128x4xf32, #tpu.memory_space<vmem>>, vector<128x4xf32>
    %7 = arith.index_cast %4 : i32 to index
    %c0_6 = arith.constant 0 : index
    %8 = vector.load %arg5[%7, %c0_6] : memref<128x4xf32, #tpu.memory_space<vmem>>, vector<128x4xf32>
    %cst = arith.constant dense<0.000000e+00> : vector<128x16xf32>
    %9 = tpu.matmul %6, %1, %cst {dimension_numbers = #tpu.dot_dimension_numbers<[1], [0], [0], [1], [0, 0, 1, 1], [], []>} : vector<128x4xf32>, vector<4x16xf32>, vector<128x16xf32> -> vector<128x16xf32>
    %cst_7 = arith.constant dense<0.000000e+00> : vector<128x16xf32>
    %10 = tpu.matmul %8, %2, %cst_7 {dimension_numbers = #tpu.dot_dimension_numbers<[1], [0], [0], [1], [0, 0, 1, 1], [], []>} : vector<128x4xf32>, vector<4x16xf32>, vector<128x16xf32> -> vector<128x16xf32>
    %11 = arith.mulf %9, %10 : vector<128x16xf32>
    %cst_8 = arith.constant dense<0.000000e+00> : vector<128x16xf32>
    %12 = tpu.matmul %11, %0, %cst_8 {dimension_numbers = #tpu.dot_dimension_numbers<[1], [0], [0], [1], [0, 0, 1, 1], [], []>} : vector<128x16xf32>, vector<16x16xf32>, vector<128x16xf32> -> vector<128x16xf32>
    %13 = arith.index_cast %4 : i32 to index
    %c0_9 = arith.constant 0 : index
    %14 = vector.load %arg6[%13, %c0_9] : memref<128x16xf32, #tpu.memory_space<vmem>>, vector<128x16xf32>
    tpu.vector_store %arg6[%13, %c0_9], %12 {strides = array<i32>} : memref<128x16xf32, #tpu.memory_space<vmem>>, vector<128x16xf32>,
    %c1_i32 = arith.constant 1 : i32
    return
  }
  func.func @transform_0(%arg0: i32) -> (i32, i32) {
    %c0_i32 = arith.constant 0 : i32
    %c0_i32_0 = arith.constant 0 : i32
    %c0_i32_1 = arith.constant 0 : i32
    return %c0_i32, %c0_i32_0 : i32, i32
  }
  func.func @transform_1(%arg0: i32) -> (i32, i32) {
    %c0_i32 = arith.constant 0 : i32
    %c0_i32_0 = arith.constant 0 : i32
    %c0_i32_1 = arith.constant 0 : i32
    return %c0_i32, %c0_i32_0 : i32, i32
  }
  func.func @transform_2(%arg0: i32) -> (i32, i32) {
    %c0_i32 = arith.constant 0 : i32
    %c0_i32_0 = arith.constant 0 : i32
    %c0_i32_1 = arith.constant 0 : i32
    return %c0_i32, %c0_i32_0 : i32, i32
  }
  func.func @transform_3(%arg0: i32) -> (i32, i32) {
    %c0_i32 = arith.constant 0 : i32
    %c0_i32_0 = arith.constant 0 : i32
    return %arg0, %c0_i32 : i32, i32
  }
  func.func @transform_4(%arg0: i32) -> (i32, i32) {
    %c0_i32 = arith.constant 0 : i32
    %c0_i32_0 = arith.constant 0 : i32
    return %arg0, %c0_i32 : i32, i32
  }
  func.func @transform_5(%arg0: i32) -> (i32, i32) {
    %c0_i32 = arith.constant 0 : i32
    %c0_i32_0 = arith.constant 0 : i32
    return %arg0, %c0_i32 : i32, i32
  }
}

</mosaic_0001>

<llo_original>
// kernel: coo_tensor_product.1
$region0: #{coo_tensor_product.1}
  #allocation0 [shape = 'u32[]', space=smem, size = 0x4, offset = 0x4, fixed_abs, tag = 'smem constant byte address 0x4 - core index']
  #allocation1 [shape = 'u32[144,128]{1,0:T(1,128)}', space=vmem, size = 0x12000, scoped, tag = 'internal scratch']
  %s0 = inlined_call_operand.vmem [shape: f32[16,16], index: 0, kind: input, shape index: {}]
  %s1 = inlined_call_operand.vmem [shape: f32[4,16], index: 1, kind: input, shape index: {}]
  %s2 = inlined_call_operand.vmem [shape: f32[4,16], index: 2, kind: input, shape index: {}]
  %s3 = inlined_call_operand.vmem [shape: f32[8,4], index: 3, kind: input, shape index: {}]
  %s4 = inlined_call_operand.vmem [shape: f32[8,4], index: 4, kind: input, shape index: {}]
  %s5 = inlined_call_operand.hbm [shape: f32[8,16], index: 5, kind: output, shape index: {}]
  %s6 = sld [smem:[#allocation0]]
  $region30: #{coo_tensor_product.1} parent=0
    _
  %s8 = ssub.s32 1, %s6
  %s9 = scalar_select 0, %s8, %s6
  $region1: #{coo_tensor_product.1} parent=0
    #allocation2 [shape = 'u8[65536]{0}', space=vmem, size = 0x10000, scoped, tag = 'output window, operand 0, single buffered']
    #allocation3 [shape = 's32[1]{0}', space=sflag, size = 0x4, scoped, tag = 'scoped memory for coo_tensor_product.1']
    %10 = vsyncpa [#allocation3], 0
    // Predicated region
    $region2: #{coo_tensor_product.1} parent=1 // pred_check
      _
    $region3: #{coo_tensor_product.1} parent=1 // pred_check_branch
      %12 = sbr.rel (0) target = $region5
    $region4: #{coo_tensor_product.1} parent=1 // pred_region
      _
    $region5: #{coo_tensor_product.1} parent=1 // pred_fallthru
      _
    // Predicated region
    $region6: #{coo_tensor_product.1} parent=1 // pred_check
      _
    $region7: #{coo_tensor_product.1} parent=1 // pred_check_branch
      %14 = sbr.rel (0) target = $region9
    $region8: #{coo_tensor_product.1} parent=1 // pred_region
      _
    $region9: #{coo_tensor_product.1} parent=1 // pred_fallthru
      _
    // Predicated region
    $region10: #{coo_tensor_product.1} parent=1 // pred_check
      _
    $region11: #{coo_tensor_product.1} parent=1 // pred_check_branch
      %16 = sbr.rel (0) target = $region13
    $region12: #{coo_tensor_product.1} parent=1 // pred_region
      _
    $region13: #{coo_tensor_product.1} parent=1 // pred_fallthru
      _
    // Predicated region
    $region14: #{coo_tensor_product.1} parent=1 // pred_check
      _
    $region15: #{coo_tensor_product.1} parent=1 // pred_check_branch
      %18 = sbr.rel (0) target = $region17
    $region16: #{coo_tensor_product.1} parent=1 // pred_region
      _
    $region17: #{coo_tensor_product.1} parent=1 // pred_fallthru
      _
    // Predicated region
    $region18: #{coo_tensor_product.1} parent=1 // pred_check
      _
    $region19: #{coo_tensor_product.1} parent=1 // pred_check_branch
      %20 = sbr.rel (0) target = $region21
    $region20: #{coo_tensor_product.1} parent=1 // pred_region
      _
    $region21: #{coo_tensor_product.1} parent=1 // pred_fallthru
      _
    %v21 = vld [vmem:[%s0] sm:$0xff]
    %v22 = vld [vmem:[%s0 + $0x8] sm:$0xff]
    %v23 = vld [vmem:[%s1] sm:$0xf]
    %v24 = vld [vmem:[%s2] sm:$0xf]
    %v25 = vld [vmem:[%s3] sm:$0xff]
    %v26 = vld [vmem:[%s3 + $0x8] sm:$0xff]
    %v27 = vld [vmem:[%s3 + $0x10] sm:$0xff]
    %v28 = vld [vmem:[%s3 + $0x18] sm:$0xff]
    %v29 = vld [vmem:[%s3 + $0x20] sm:$0xff]
    %v30 = vld [vmem:[%s3 + $0x28] sm:$0xff]
    %v31 = vld [vmem:[%s3 + $0x30] sm:$0xff]
    %v32 = vld [vmem:[%s3 + $0x38] sm:$0xff]
    %v33 = vld [vmem:[%s3 + $0x40] sm:$0xff]
    %v34 = vld [vmem:[%s3 + $0x48] sm:$0xff]
    %v35 = vld [vmem:[%s3 + $0x50] sm:$0xff]
    %v36 = vld [vmem:[%s3 + $0x58] sm:$0xff]
    %v37 = vld [vmem:[%s3 + $0x60] sm:$0xff]
    %v38 = vld [vmem:[%s3 + $0x68] sm:$0xff]
    %v39 = vld [vmem:[%s3 + $0x70] sm:$0xff]
    %v40 = vld [vmem:[%s3 + $0x78] sm:$0xff]
    %v41 = vld [vmem:[%s4] sm:$0xff]
    %v42 = vld [vmem:[%s4 + $0x8] sm:$0xff]
    %v43 = vld [vmem:[%s4 + $0x10] sm:$0xff]
    %v44 = vld [vmem:[%s4 + $0x18] sm:$0xff]
    %v45 = vld [vmem:[%s4 + $0x20] sm:$0xff]
    %v46 = vld [vmem:[%s4 + $0x28] sm:$0xff]
    %v47 = vld [vmem:[%s4 + $0x30] sm:$0xff]
    %v48 = vld [vmem:[%s4 + $0x38] sm:$0xff]
    %v49 = vld [vmem:[%s4 + $0x40] sm:$0xff]
    %v50 = vld [vmem:[%s4 + $0x48] sm:$0xff]
    %v51 = vld [vmem:[%s4 + $0x50] sm:$0xff]
    %v52 = vld [vmem:[%s4 + $0x58] sm:$0xff]
    %v53 = vld [vmem:[%s4 + $0x60] sm:$0xff]
    %v54 = vld [vmem:[%s4 + $0x68] sm:$0xff]
    %v55 = vld [vmem:[%s4 + $0x70] sm:$0xff]
    %v56 = vld [vmem:[%s4 + $0x78] sm:$0xff]
    %vm57 = vcmask 31744
    %v59 = vsel %vm57, %v25, 0
    %v62 = vsel %vm57, %v26, 0
    %v65 = vsel %vm57, %v27, 0
    %v68 = vsel %vm57, %v28, 0
    %v71 = vsel %vm57, %v29, 0
    %v74 = vsel %vm57, %v30, 0
    %v77 = vsel %vm57, %v31, 0
    %v80 = vsel %vm57, %v32, 0
    %v83 = vsel %vm57, %v33, 0
    %v86 = vsel %vm57, %v34, 0
    %v89 = vsel %vm57, %v35, 0
    %v92 = vsel %vm57, %v36, 0
    %v95 = vsel %vm57, %v37, 0
    %v98 = vsel %vm57, %v38, 0
    %v101 = vsel %vm57, %v39, 0
    %v104 = vsel %vm57, %v40, 0
    %vm106 = vcmask 1043456
    %v108 = vsel %vm106, %v23, 0
    %110 = vmatprep.subr.mxu0 0.0
    %111 = vmatpush1.msra.mxu0 %v108
    %112 = vmatprep.subr.mxu0 0.0
    %113 = vmatpush1.msra.mxu0 0.0
    %114 = vmatprep.subr.mxu0 0.0
    %115 = vmatpush1.msra.mxu0 0.0
    %116 = vmatprep.subr.mxu0 0.0
    %117 = vmatpush1.msra.mxu0 0.0
    %118 = vmatprep.subr.mxu0 0.0
    %119 = vmatpush1.msra.mxu0 0.0
    %120 = vmatprep.subr.mxu0 0.0
    %121 = vmatpush1.msra.mxu0 0.0
    %122 = vmatprep.subr.mxu0 0.0
    %123 = vmatpush1.msra.mxu0 0.0
    %124 = vmatprep.subr.mxu0 0.0
    %125 = vmatpush1.msra.mxu0 0.0
    %126 = vmatprep.subr.mxu0 0.0
    %127 = vmatpush1.msra.mxu0 0.0
    %128 = vmatprep.subr.mxu0 0.0
    %129 = vmatpush1.msra.mxu0 0.0
    %130 = vmatprep.subr.mxu0 0.0
    %131 = vmatpush1.msra.mxu0 0.0
    %132 = vmatprep.subr.mxu0 0.0
    %133 = vmatpush1.msra.mxu0 0.0
    %134 = vmatprep.subr.mxu0 0.0
    %135 = vmatpush1.msra.mxu0 0.0
    %136 = vmatprep.subr.mxu0 0.0
    %137 = vmatpush1.msra.mxu0 0.0
    %138 = vmatprep.subr.mxu0 0.0
    %139 = vmatpush1.msra.mxu0 0.0
    %140 = vmatprep.subr.mxu0 0.0
    %141 = vmatpush1.msra.mxu0 0.0
    %142 = vmatprep.subr.mxu0 0.0
    %143 = vmatpush1.msra.mxu0 0.0
    %144 = vmatprep.subr.mxu0 0.0
    %145 = vmatpush1.msra.mxu0 0.0
    %146 = vmatprep.subr.mxu0 0.0
    %147 = vmatpush1.msra.mxu0 0.0
    %148 = vmatprep.subr.mxu0 0.0
    %149 = vmatpush1.msra.mxu0 0.0
    %150 = vmatprep.subr.mxu0 0.0
    %151 = vmatpush1.msra.mxu0 0.0
    %152 = vmatprep.subr.mxu0 0.0
    %153 = vmatpush1.msra.mxu0 0.0
    %154 = vmatprep.subr.mxu0 0.0
    %155 = vmatpush1.msra.mxu0 0.0
    %156 = vmatprep.subr.mxu0 0.0
    %157 = vmatpush1.msra.mxu0 0.0
    %158 = vmatprep.subr.mxu0 0.0
    %159 = vmatpush1.msra.mxu0 0.0
    %160 = vmatprep.subr.mxu0 0.0
    %161 = vmatpush1.msra.mxu0 0.0
    %162 = vmatprep.subr.mxu0 0.0
    %163 = vmatpush1.msra.mxu0 0.0
    %164 = vmatprep.subr.mxu0 0.0
    %165 = vmatpush1.msra.mxu0 0.0
    %166 = vmatprep.subr.mxu0 0.0
    %167 = vmatpush1.msra.mxu0 0.0
    %168 = vmatprep.subr.mxu0 0.0
    %169 = vmatpush1.msra.mxu0 0.0
    %170 = vmatprep.subr.mxu0 0.0
    %171 = vmatpush1.msra.mxu0 0.0
    %172 = vmatprep.subr.mxu0 0.0
    %173 = vmatpush1.msra.mxu0 0.0
    %174 = vmatprep.mubr.f32.mxu0 0.0
    %175 = vmatmul.mubr.f32.gmra.mrb[0].mxu0 %v59
    %v176 = vpop.f32.mrb[0].mxu0
    %v177 = vadd.f32 0.0, %v176
    %v178 = vpop.f32.mrb[0].mxu0
    %179 = vmatprep.mubr.f32.mxu0 0.0
    %180 = vmatmul.mubr.f32.gmra.mrb[0].mxu0 %v62
    %v181 = vpop.f32.mrb[0].mxu0
    %v182 = vadd.f32 0.0, %v181
    %v183 = vpop.f32.mrb[0].mxu0
    %184 = vmatprep.mubr.f32.mxu0 0.0
    %185 = vmatmul.mubr.f32.gmra.mrb[0].mxu0 %v65
    %v186 = vpop.f32.mrb[0].mxu0
    %v187 = vadd.f32 0.0, %v186
    %v188 = vpop.f32.mrb[0].mxu0
    %189 = vmatprep.mubr.f32.mxu0 0.0
    %190 = vmatmul.mubr.f32.gmra.mrb[0].mxu0 %v68
    %v191 = vpop.f32.mrb[0].mxu0
    %v192 = vadd.f32 0.0, %v191
    %v193 = vpop.f32.mrb[0].mxu0
    %194 = vmatprep.mubr.f32.mxu0 0.0
    %195 = vmatmul.mubr.f32.gmra.mrb[0].mxu0 %v71
    %v196 = vpop.f32.mrb[0].mxu0
    %v197 = vadd.f32 0.0, %v196
    %v198 = vpop.f32.mrb[0].mxu0
    %199 = vmatprep.mubr.f32.mxu0 0.0
    %200 = vmatmul.mubr.f32.gmra.mrb[0].mxu0 %v74
    %v201 = vpop.f32.mrb[0].mxu0
    %v202 = vadd.f32 0.0, %v201
    %v203 = vpop.f32.mrb[0].mxu0
    %204 = vmatprep.mubr.f32.mxu0 0.0
    %205 = vmatmul.mubr.f32.gmra.mrb[0].mxu0 %v77
    %v206 = vpop.f32.mrb[0].mxu0
    %v207 = vadd.f32 0.0, %v206
    %v208 = vpop.f32.mrb[0].mxu0
    %209 = vmatprep.mubr.f32.mxu0 0.0
    %210 = vmatmul.mubr.f32.gmra.mrb[0].mxu0 %v80
    %v211 = vpop.f32.mrb[0].mxu0
    %v212 = vadd.f32 0.0, %v211
    %v213 = vpop.f32.mrb[0].mxu0
    %214 = vmatprep.mubr.f32.mxu0 0.0
    %215 = vmatmul.mubr.f32.gmra.mrb[0].mxu0 %v83
    %v216 = vpop.f32.mrb[0].mxu0
    %v217 = vadd.f32 0.0, %v216
    %v218 = vpop.f32.mrb[0].mxu0
    %219 = vmatprep.mubr.f32.mxu0 0.0
    %220 = vmatmul.mubr.f32.gmra.mrb[0].mxu0 %v86
    %v221 = vpop.f32.mrb[0].mxu0
    %v222 = vadd.f32 0.0, %v221
    %v223 = vpop.f32.mrb[0].mxu0
    %224 = vmatprep.mubr.f32.mxu0 0.0
    %225 = vmatmul.mubr.f32.gmra.mrb[0].mxu0 %v89
    %v226 = vpop.f32.mrb[0].mxu0
    %v227 = vadd.f32 0.0, %v226
    %v228 = vpop.f32.mrb[0].mxu0
    %229 = vmatprep.mubr.f32.mxu0 0.0
    %230 = vmatmul.mubr.f32.gmra.mrb[0].mxu0 %v92
    %v231 = vpop.f32.mrb[0].mxu0
    %v232 = vadd.f32 0.0, %v231
    %v233 = vpop.f32.mrb[0].mxu0
    %234 = vmatprep.mubr.f32.mxu0 0.0
    %235 = vmatmul.mubr.f32.gmra.mrb[0].mxu0 %v95
    %v236 = vpop.f32.mrb[0].mxu0
    %v237 = vadd.f32 0.0, %v236
    %v238 = vpop.f32.mrb[0].mxu0
    %239 = vmatprep.mubr.f32.mxu0 0.0
    %240 = vmatmul.mubr.f32.gmra.mrb[0].mxu0 %v98
    %v241 = vpop.f32.mrb[0].mxu0
    %v242 = vadd.f32 0.0, %v241
    %v243 = vpop.f32.mrb[0].mxu0
    %244 = vmatprep.mubr.f32.mxu0 0.0
    %245 = vmatmul.mubr.f32.gmra.mrb[0].mxu0 %v101
    %v246 = vpop.f32.mrb[0].mxu0
    %v247 = vadd.f32 0.0, %v246
    %v248 = vpop.f32.mrb[0].mxu0
    %249 = vmatprep.mubr.f32.mxu0 0.0
    %250 = vmatmul.mubr.f32.gmra.mrb[0].mxu0 %v104
    %v251 = vpop.f32.mrb[0].mxu0
    %v252 = vadd.f32 0.0, %v251
    %v253 = vpop.f32.mrb[0].mxu0
    %254 = vdwg.mxu0
    %v256 = vsel %vm57, %v41, 0
    %v259 = vsel %vm57, %v42, 0
    %v262 = vsel %vm57, %v43, 0
    %v265 = vsel %vm57, %v44, 0
    %v268 = vsel %vm57, %v45, 0
    %v271 = vsel %vm57, %v46, 0
    %v274 = vsel %vm57, %v47, 0
    %v277 = vsel %vm57, %v48, 0
    %v280 = vsel %vm57, %v49, 0
    %v283 = vsel %vm57, %v50, 0
    %v286 = vsel %vm57, %v51, 0
    %v289 = vsel %vm57, %v52, 0
    %v292 = vsel %vm57, %v53, 0
    %v295 = vsel %vm57, %v54, 0
    %v298 = vsel %vm57, %v55, 0
    %v301 = vsel %vm57, %v56, 0
    %v304 = vsel %vm106, %v24, 0
    %306 = vmatprep.subr.mxu0 0.0
    %307 = vmatpush1.msra.mxu0 %v304
    %308 = vmatprep.subr.mxu0 0.0
    %309 = vmatpush1.msra.mxu0 0.0
    %310 = vmatprep.subr.mxu0 0.0
    %311 = vmatpush1.msra.mxu0 0.0
    %312 = vmatprep.subr.mxu0 0.0
    %313 = vmatpush1.msra.mxu0 0.0
    %314 = vmatprep.subr.mxu0 0.0
    %315 = vmatpush1.msra.mxu0 0.0
    %316 = vmatprep.subr.mxu0 0.0
    %317 = vmatpush1.msra.mxu0 0.0
    %318 = vmatprep.subr.mxu0 0.0
    %319 = vmatpush1.msra.mxu0 0.0
    %320 = vmatprep.subr.mxu0 0.0
    %321 = vmatpush1.msra.mxu0 0.0
    %322 = vmatprep.subr.mxu0 0.0
    %323 = vmatpush1.msra.mxu0 0.0
    %324 = vmatprep.subr.mxu0 0.0
    %325 = vmatpush1.msra.mxu0 0.0
    %326 = vmatprep.subr.mxu0 0.0
    %327 = vmatpush1.msra.mxu0 0.0
    %328 = vmatprep.subr.mxu0 0.0
    %329 = vmatpush1.msra.mxu0 0.0
    %330 = vmatprep.subr.mxu0 0.0
    %331 = vmatpush1.msra.mxu0 0.0
    %332 = vmatprep.subr.mxu0 0.0
    %333 = vmatpush1.msra.mxu0 0.0
    %334 = vmatprep.subr.mxu0 0.0
    %335 = vmatpush1.msra.mxu0 0.0
    %336 = vmatprep.subr.mxu0 0.0
    %337 = vmatpush1.msra.mxu0 0.0
    %338 = vmatprep.subr.mxu0 0.0
    %339 = vmatpush1.msra.mxu0 0.0
    %340 = vmatprep.subr.mxu0 0.0
    %341 = vmatpush1.msra.mxu0 0.0
    %342 = vmatprep.subr.mxu0 0.0
    %343 = vmatpush1.msra.mxu0 0.0
    %344 = vmatprep.subr.mxu0 0.0
    %345 = vmatpush1.msra.mxu0 0.0
    %346 = vmatprep.subr.mxu0 0.0
    %347 = vmatpush1.msra.mxu0 0.0
    %348 = vmatprep.subr.mxu0 0.0
    %349 = vmatpush1.msra.mxu0 0.0
    %350 = vmatprep.subr.mxu0 0.0
    %351 = vmatpush1.msra.mxu0 0.0
    %352 = vmatprep.subr.mxu0 0.0
    %353 = vmatpush1.msra.mxu0 0.0
    %354 = vmatprep.subr.mxu0 0.0
    %355 = vmatpush1.msra.mxu0 0.0
    %356 = vmatprep.subr.mxu0 0.0
    %357 = vmatpush1.msra.mxu0 0.0
    %358 = vmatprep.subr.mxu0 0.0
    %359 = vmatpush1.msra.mxu0 0.0
    %360 = vmatprep.subr.mxu0 0.0
    %361 = vmatpush1.msra.mxu0 0.0
    %362 = vmatprep.subr.mxu0 0.0
    %363 = vmatpush1.msra.mxu0 0.0
    %364 = vmatprep.subr.mxu0 0.0
    %365 = vmatpush1.msra.mxu0 0.0
    %366 = vmatprep.subr.mxu0 0.0
    %367 = vmatpush1.msra.mxu0 0.0
    %368 = vmatprep.subr.mxu0 0.0
    %369 = vmatpush1.msra.mxu0 0.0
    %370 = vmatprep.mubr.f32.mxu0 0.0
    %371 = vmatmul.mubr.f32.gmra.mrb[0].mxu0 %v256
    %v372 = vpop.f32.mrb[0].mxu0
    %v373 = vadd.f32 0.0, %v372
    %v374 = vpop.f32.mrb[0].mxu0
    %375 = vmatprep.mubr.f32.mxu0 0.0
    %376 = vmatmul.mubr.f32.gmra.mrb[0].mxu0 %v259
    %v377 = vpop.f32.mrb[0].mxu0
    %v378 = vadd.f32 0.0, %v377
    %v379 = vpop.f32.mrb[0].mxu0
    %380 = vmatprep.mubr.f32.mxu0 0.0
    %381 = vmatmul.mubr.f32.gmra.mrb[0].mxu0 %v262
    %v382 = vpop.f32.mrb[0].mxu0
    %v383 = vadd.f32 0.0, %v382
    %v384 = vpop.f32.mrb[0].mxu0
    %385 = vmatprep.mubr.f32.mxu0 0.0
    %386 = vmatmul.mubr.f32.gmra.mrb[0].mxu0 %v265
    %v387 = vpop.f32.mrb[0].mxu0
    %v388 = vadd.f32 0.0, %v387
    %v389 = vpop.f32.mrb[0].mxu0
    %390 = vmatprep.mubr.f32.mxu0 0.0
    %391 = vmatmul.mubr.f32.gmra.mrb[0].mxu0 %v268
    %v392 = vpop.f32.mrb[0].mxu0
    %v393 = vadd.f32 0.0, %v392
    %v394 = vpop.f32.mrb[0].mxu0
    %395 = vmatprep.mubr.f32.mxu0 0.0
    %396 = vmatmul.mubr.f32.gmra.mrb[0].mxu0 %v271
    %v397 = vpop.f32.mrb[0].mxu0
    %v398 = vadd.f32 0.0, %v397
    %v399 = vpop.f32.mrb[0].mxu0
    %400 = vmatprep.mubr.f32.mxu0 0.0
    %401 = vmatmul.mubr.f32.gmra.mrb[0].mxu0 %v274
    %v402 = vpop.f32.mrb[0].mxu0
    %v403 = vadd.f32 0.0, %v402
    %v404 = vpop.f32.mrb[0].mxu0
    %405 = vmatprep.mubr.f32.mxu0 0.0
    %406 = vmatmul.mubr.f32.gmra.mrb[0].mxu0 %v277
    %v407 = vpop.f32.mrb[0].mxu0
    %v408 = vadd.f32 0.0, %v407
    %v409 = vpop.f32.mrb[0].mxu0
    %410 = vmatprep.mubr.f32.mxu0 0.0
    %411 = vmatmul.mubr.f32.gmra.mrb[0].mxu0 %v280
    %v412 = vpop.f32.mrb[0].mxu0
    %v413 = vadd.f32 0.0, %v412
    %v414 = vpop.f32.mrb[0].mxu0
    %415 = vmatprep.mubr.f32.mxu0 0.0
    %416 = vmatmul.mubr.f32.gmra.mrb[0].mxu0 %v283
    %v417 = vpop.f32.mrb[0].mxu0
    %v418 = vadd.f32 0.0, %v417
    %v419 = vpop.f32.mrb[0].mxu0
    %420 = vmatprep.mubr.f32.mxu0 0.0
    %421 = vmatmul.mubr.f32.gmra.mrb[0].mxu0 %v286
    %v422 = vpop.f32.mrb[0].mxu0
    %v423 = vadd.f32 0.0, %v422
    %v424 = vpop.f32.mrb[0].mxu0
    %425 = vmatprep.mubr.f32.mxu0 0.0
    %426 = vmatmul.mubr.f32.gmra.mrb[0].mxu0 %v289
    %v427 = vpop.f32.mrb[0].mxu0
    %v428 = vadd.f32 0.0, %v427
    %v429 = vpop.f32.mrb[0].mxu0
    %430 = vmatprep.mubr.f32.mxu0 0.0
    %431 = vmatmul.mubr.f32.gmra.mrb[0].mxu0 %v292
    %v432 = vpop.f32.mrb[0].mxu0
    %v433 = vadd.f32 0.0, %v432
    %v434 = vpop.f32.mrb[0].mxu0
    %435 = vmatprep.mubr.f32.mxu0 0.0
    %436 = vmatmul.mubr.f32.gmra.mrb[0].mxu0 %v295
    %v437 = vpop.f32.mrb[0].mxu0
    %v438 = vadd.f32 0.0, %v437
    %v439 = vpop.f32.mrb[0].mxu0
    %440 = vmatprep.mubr.f32.mxu0 0.0
    %441 = vmatmul.mubr.f32.gmra.mrb[0].mxu0 %v298
    %v442 = vpop.f32.mrb[0].mxu0
    %v443 = vadd.f32 0.0, %v442
    %v444 = vpop.f32.mrb[0].mxu0
    %445 = vmatprep.mubr.f32.mxu0 0.0
    %446 = vmatmul.mubr.f32.gmra.mrb[0].mxu0 %v301
    %v447 = vpop.f32.mrb[0].mxu0
    %v448 = vadd.f32 0.0, %v447
    %v449 = vpop.f32.mrb[0].mxu0
    %450 = vdwg.mxu0
    %v451 = vmul.f32 %v177, %v373
    %v452 = vmul.f32 %v182, %v378
    %v453 = vmul.f32 %v187, %v383
    %v454 = vmul.f32 %v192, %v388
    %v455 = vmul.f32 %v197, %v393
    %v456 = vmul.f32 %v202, %v398
    %v457 = vmul.f32 %v207, %v403
    %v458 = vmul.f32 %v212, %v408
    %v459 = vmul.f32 %v217, %v413
    %v460 = vmul.f32 %v222, %v418
    %v461 = vmul.f32 %v227, %v423
    %v462 = vmul.f32 %v232, %v428
    %v463 = vmul.f32 %v237, %v433
    %v464 = vmul.f32 %v242, %v438
    %v465 = vmul.f32 %v247, %v443
    %v466 = vmul.f32 %v252, %v448
    %vm467 = vcmask 130048
    %v469 = vsel %vm467, %v451, 0
    %v472 = vsel %vm467, %v452, 0
    %v475 = vsel %vm467, %v453, 0
    %v478 = vsel %vm467, %v454, 0
    %v481 = vsel %vm467, %v455, 0
    %v484 = vsel %vm467, %v456, 0
    %v487 = vsel %vm467, %v457, 0
    %v490 = vsel %vm467, %v458, 0
    %v493 = vsel %vm467, %v459, 0
    %v496 = vsel %vm467, %v460, 0
    %v499 = vsel %vm467, %v461, 0
    %v502 = vsel %vm467, %v462, 0
    %v505 = vsel %vm467, %v463, 0
    %v508 = vsel %vm467, %v464, 0
    %v511 = vsel %vm467, %v465, 0
    %v514 = vsel %vm467, %v466, 0
    %516 = vmatprep.subr.mxu0 0.0
    %517 = vmatpush1.msra.mxu0 %v21
    %518 = vmatprep.subr.mxu0 0.0
    %519 = vmatpush1.msra.mxu0 %v22
    %520 = vmatprep.subr.mxu0 0.0
    %521 = vmatpush1.msra.mxu0 0.0
    %522 = vmatprep.subr.mxu0 0.0
    %523 = vmatpush1.msra.mxu0 0.0
    %524 = vmatprep.subr.mxu0 0.0
    %525 = vmatpush1.msra.mxu0 0.0
    %526 = vmatprep.subr.mxu0 0.0
    %527 = vmatpush1.msra.mxu0 0.0
    %528 = vmatprep.subr.mxu0 0.0
    %529 = vmatpush1.msra.mxu0 0.0
    %530 = vmatprep.subr.mxu0 0.0
    %531 = vmatpush1.msra.mxu0 0.0
    %532 = vmatprep.subr.mxu0 0.0
    %533 = vmatpush1.msra.mxu0 0.0
    %534 = vmatprep.subr.mxu0 0.0
    %535 = vmatpush1.msra.mxu0 0.0
    %536 = vmatprep.subr.mxu0 0.0
    %537 = vmatpush1.msra.mxu0 0.0
    %538 = vmatprep.subr.mxu0 0.0
    %539 = vmatpush1.msra.mxu0 0.0
    %540 = vmatprep.subr.mxu0 0.0
    %541 = vmatpush1.msra.mxu0 0.0
    %542 = vmatprep.subr.mxu0 0.0
    %543 = vmatpush1.msra.mxu0 0.0
    %544 = vmatprep.subr.mxu0 0.0
    %545 = vmatpush1.msra.mxu0 0.0
    %546 = vmatprep.subr.mxu0 0.0
    %547 = vmatpush1.msra.mxu0 0.0
    %548 = vmatprep.subr.mxu0 0.0
    %549 = vmatpush1.msra.mxu0 0.0
    %550 = vmatprep.subr.mxu0 0.0
    %551 = vmatpush1.msra.mxu0 0.0
    %552 = vmatprep.subr.mxu0 0.0
    %553 = vmatpush1.msra.mxu0 0.0
    %554 = vmatprep.subr.mxu0 0.0
    %555 = vmatpush1.msra.mxu0 0.0
    %556 = vmatprep.subr.mxu0 0.0
    %557 = vmatpush1.msra.mxu0 0.0
    %558 = vmatprep.subr.mxu0 0.0
    %559 = vmatpush1.msra.mxu0 0.0
    %560 = vmatprep.subr.mxu0 0.0
    %561 = vmatpush1.msra.mxu0 0.0
    %562 = vmatprep.subr.mxu0 0.0
    %563 = vmatpush1.msra.mxu0 0.0
    %564 = vmatprep.subr.mxu0 0.0
    %565 = vmatpush1.msra.mxu0 0.0
    %566 = vmatprep.subr.mxu0 0.0
    %567 = vmatpush1.msra.mxu0 0.0
    %568 = vmatprep.subr.mxu0 0.0
    %569 = vmatpush1.msra.mxu0 0.0
    %570 = vmatprep.subr.mxu0 0.0
    %571 = vmatpush1.msra.mxu0 0.0
    %572 = vmatprep.subr.mxu0 0.0
    %573 = vmatpush1.msra.mxu0 0.0
    %574 = vmatprep.subr.mxu0 0.0
    %575 = vmatpush1.msra.mxu0 0.0
    %576 = vmatprep.subr.mxu0 0.0
    %577 = vmatpush1.msra.mxu0 0.0
    %578 = vmatprep.subr.mxu0 0.0
    %579 = vmatpush1.msra.mxu0 0.0
    %580 = vmatprep.mubr.f32.mxu0 0.0
    %581 = vmatmul.mubr.f32.gmra.mrb[0].mxu0 %v469
    %v582 = vpop.f32.mrb[0].mxu0
    %v583 = vadd.f32 0.0, %v582
    %v584 = vpop.f32.mrb[0].mxu0
    %585 = vmatprep.mubr.f32.mxu0 0.0
    %586 = vmatmul.mubr.f32.gmra.mrb[0].mxu0 %v472
    %v587 = vpop.f32.mrb[0].mxu0
    %v588 = vadd.f32 0.0, %v587
    %v589 = vpop.f32.mrb[0].mxu0
    %590 = vmatprep.mubr.f32.mxu0 0.0
    %591 = vmatmul.mubr.f32.gmra.mrb[0].mxu0 %v475
    %v592 = vpop.f32.mrb[0].mxu0
    %v593 = vadd.f32 0.0, %v592
    %v594 = vpop.f32.mrb[0].mxu0
    %595 = vmatprep.mubr.f32.mxu0 0.0
    %596 = vmatmul.mubr.f32.gmra.mrb[0].mxu0 %v478
    %v597 = vpop.f32.mrb[0].mxu0
    %v598 = vadd.f32 0.0, %v597
    %v599 = vpop.f32.mrb[0].mxu0
    %600 = vmatprep.mubr.f32.mxu0 0.0
    %601 = vmatmul.mubr.f32.gmra.mrb[0].mxu0 %v481
    %v602 = vpop.f32.mrb[0].mxu0
    %v603 = vadd.f32 0.0, %v602
    %v604 = vpop.f32.mrb[0].mxu0
    %605 = vmatprep.mubr.f32.mxu0 0.0
    %606 = vmatmul.mubr.f32.gmra.mrb[0].mxu0 %v484
    %v607 = vpop.f32.mrb[0].mxu0
    %v608 = vadd.f32 0.0, %v607
    %v609 = vpop.f32.mrb[0].mxu0
    %610 = vmatprep.mubr.f32.mxu0 0.0
    %611 = vmatmul.mubr.f32.gmra.mrb[0].mxu0 %v487
    %v612 = vpop.f32.mrb[0].mxu0
    %v613 = vadd.f32 0.0, %v612
    %v614 = vpop.f32.mrb[0].mxu0
    %615 = vmatprep.mubr.f32.mxu0 0.0
    %616 = vmatmul.mubr.f32.gmra.mrb[0].mxu0 %v490
    %v617 = vpop.f32.mrb[0].mxu0
    %v618 = vadd.f32 0.0, %v617
    %v619 = vpop.f32.mrb[0].mxu0
    %620 = vmatprep.mubr.f32.mxu0 0.0
    %621 = vmatmul.mubr.f32.gmra.mrb[0].mxu0 %v493
    %v622 = vpop.f32.mrb[0].mxu0
    %v623 = vadd.f32 0.0, %v622
    %v624 = vpop.f32.mrb[0].mxu0
    %625 = vmatprep.mubr.f32.mxu0 0.0
    %626 = vmatmul.mubr.f32.gmra.mrb[0].mxu0 %v496
    %v627 = vpop.f32.mrb[0].mxu0
    %v628 = vadd.f32 0.0, %v627
    %v629 = vpop.f32.mrb[0].mxu0
    %630 = vmatprep.mubr.f32.mxu0 0.0
    %631 = vmatmul.mubr.f32.gmra.mrb[0].mxu0 %v499
    %v632 = vpop.f32.mrb[0].mxu0
    %v633 = vadd.f32 0.0, %v632
    %v634 = vpop.f32.mrb[0].mxu0
    %635 = vmatprep.mubr.f32.mxu0 0.0
    %636 = vmatmul.mubr.f32.gmra.mrb[0].mxu0 %v502
    %v637 = vpop.f32.mrb[0].mxu0
    %v638 = vadd.f32 0.0, %v637
    %v639 = vpop.f32.mrb[0].mxu0
    %640 = vmatprep.mubr.f32.mxu0 0.0
    %641 = vmatmul.mubr.f32.gmra.mrb[0].mxu0 %v505
    %v642 = vpop.f32.mrb[0].mxu0
    %v643 = vadd.f32 0.0, %v642
    %v644 = vpop.f32.mrb[0].mxu0
    %645 = vmatprep.mubr.f32.mxu0 0.0
    %646 = vmatmul.mubr.f32.gmra.mrb[0].mxu0 %v508
    %v647 = vpop.f32.mrb[0].mxu0
    %v648 = vadd.f32 0.0, %v647
    %v649 = vpop.f32.mrb[0].mxu0
    %650 = vmatprep.mubr.f32.mxu0 0.0
    %651 = vmatmul.mubr.f32.gmra.mrb[0].mxu0 %v511
    %v652 = vpop.f32.mrb[0].mxu0
    %v653 = vadd.f32 0.0, %v652
    %v654 = vpop.f32.mrb[0].mxu0
    %655 = vmatprep.mubr.f32.mxu0 0.0
    %656 = vmatmul.mubr.f32.gmra.mrb[0].mxu0 %v514
    %v657 = vpop.f32.mrb[0].mxu0
    %v658 = vadd.f32 0.0, %v657
    %v659 = vpop.f32.mrb[0].mxu0
    %660 = vdwg.mxu0
    %661 = vst.msk [vmem:[#allocation2] sm:$0xff] %vm467, %v583
    %662 = vst.msk [vmem:[#allocation2 + $0x8] sm:$0xff] %vm467, %v588
    %663 = vst.msk [vmem:[#allocation2 + $0x10] sm:$0xff] %vm467, %v593
    %664 = vst.msk [vmem:[#allocation2 + $0x18] sm:$0xff] %vm467, %v598
    %665 = vst.msk [vmem:[#allocation2 + $0x20] sm:$0xff] %vm467, %v603
    %666 = vst.msk [vmem:[#allocation2 + $0x28] sm:$0xff] %vm467, %v608
    %667 = vst.msk [vmem:[#allocation2 + $0x30] sm:$0xff] %vm467, %v613
    %668 = vst.msk [vmem:[#allocation2 + $0x38] sm:$0xff] %vm467, %v618
    %669 = vst.msk [vmem:[#allocation2 + $0x40] sm:$0xff] %vm467, %v623
    %670 = vst.msk [vmem:[#allocation2 + $0x48] sm:$0xff] %vm467, %v628
    %671 = vst.msk [vmem:[#allocation2 + $0x50] sm:$0xff] %vm467, %v633
    %672 = vst.msk [vmem:[#allocation2 + $0x58] sm:$0xff] %vm467, %v638
    %673 = vst.msk [vmem:[#allocation2 + $0x60] sm:$0xff] %vm467, %v643
    %674 = vst.msk [vmem:[#allocation2 + $0x68] sm:$0xff] %vm467, %v648
    %675 = vst.msk [vmem:[#allocation2 + $0x70] sm:$0xff] %vm467, %v653
    %676 = vst.msk [vmem:[#allocation2 + $0x78] sm:$0xff] %vm467, %v658
    // Predicated region
    $region22: #{coo_tensor_product.1} parent=1 // pred_check
      _
    $region23: #{coo_tensor_product.1} parent=1 // pred_check_branch
      %678 = sbr.rel (0) target = $region25
    $region24: #{coo_tensor_product.1} parent=1 // pred_region
      %s680 = ssub.s32 2048, 128
      %681 = vsyncadd [#allocation3], %s680
      %s682 = sshll.u32 [#allocation2], 4
      %s683 = int_to_ptr.vmem [resolvable:$true] %s682
      %688 = dma.vmem_to_hbm [thread:$0]  %s683, 128, %s5, [#allocation3], 128, 128, 8
    $region25: #{coo_tensor_product.1} parent=1 // pred_fallthru
      _
    // Predicated region
    $region26: #{coo_tensor_product.1} parent=1 // pred_check
      _
    $region27: #{coo_tensor_product.1} parent=1 // pred_check_branch
      %690 = sbr.rel (0) target = $region29
    $region28: #{coo_tensor_product.1} parent=1 // pred_region
      %691 = dma.done [#allocation3], 2048
    $region29: #{coo_tensor_product.1} parent=1 // pred_fallthru
      _
    %692 = vsyncpa [#allocation3], 1

</llo_original>
